<compile_context>
chip_gen: v6e
topology: v6e:2x2x1
jax: 0.10.0
libtpu: 0.0.40
codegen_flags: <defaults>
</compile_context>

<pallas_src>
import functools

import jax
import jax.numpy as jnp
from jax.experimental import pallas as pl
from jax.experimental.pallas import tpu as pltpu


def _round_up(x, m):
    return (x + m - 1) // m * m


def _scale_kernel(x_ref, s_ref, o_ref, *, tile_rows):
    # x_ref: (tile_rows, HW_pad) input tile, streamed per grid step.
    # s_ref: (NC_pad, 1) full per-row scale column, resident across the grid
    #        (constant index_map), so it is DMA'd from HBM exactly once.
    # o_ref: (tile_rows, HW_pad) output tile.
    row0 = pl.multiple_of(pl.program_id(0) * tile_rows, tile_rows)
    o_ref[...] = x_ref[...] * s_ref[pl.ds(row0, tile_rows), :]


def scale_layer(x_nchw, scale_c11, *, target_block_bytes=2 * 1024 * 1024):
    """Applies y = x * scale with per-channel (C,1,1) scale, NCHW input."""
    N, C, H, W = x_nchw.shape
    dtype = x_nchw.dtype
    itemsize = jnp.dtype(dtype).itemsize

    # Keep everything in the input dtype (avoid silent f32 promotion when the
    # input is bf16 etc.).
    scale = scale_c11.astype(dtype)

    HW = H * W
    NC = N * C

    # Lane-dense last dim: pad spatial axis to a multiple of 128 so stores are
    # full (unmasked) vst's.
    HW_pad = _round_up(HW, 128)

    # Sublane pack for the dtype: 8 (f32), 16 (bf16), 32 (int8/fp8).
    pack = max(8, 32 // itemsize)

    # Biggest row-tile that keeps one block near target_block_bytes (~2 MiB;
    # 2x in + 2x out double-buffered ~ 8 MiB -> safe under the 16 MiB v5e and
    # 32 MiB v6e/v7x default scoped-VMEM limits) and is a multiple of the
    # sublane pack.  Tiny inputs collapse to a single block.
    rows_for_target = max(
        pack, (target_block_bytes // (HW_pad * itemsize)) // pack * pack
    )
    NC_ceil = _round_up(NC, pack)
    tile_rows = min(rows_for_target, NC_ceil)
    NC_pad = _round_up(NC, tile_rows)
    grid = (NC_pad // tile_rows,)

    # ---- wrapper-side layout plumbing only (no compute hoisted here) ----
    x2d = x_nchw.reshape(NC, HW)
    # scale (C,1,1) -> per-row column matching the n-major / c-minor row order
    # of the (N*C) flattening.
    s_rows = jnp.tile(scale.reshape(C), (N,)).reshape(NC, 1)

    if HW_pad != HW or NC_pad != NC:
        x2d = jnp.pad(x2d, ((0, NC_pad - NC), (0, HW_pad - HW)))
    if NC_pad != NC:
        s_rows = jnp.pad(s_rows, ((0, NC_pad - NC), (0, 0)))

    out2d = pl.pallas_call(
        functools.partial(_scale_kernel, tile_rows=tile_rows),
        out_shape=jax.ShapeDtypeStruct((NC_pad, HW_pad), dtype),
        grid_spec=pltpu.PrefetchScalarGridSpec(
            num_scalar_prefetch=0,
            grid=grid,
            in_specs=[
                # Large lane-dense x tile, streamed (double-buffered) per step.
                pl.BlockSpec((tile_rows, HW_pad), lambda i: (i, 0)),
                # Full per-row scale column, resident for the whole grid.
                pl.BlockSpec((NC_pad, 1), lambda i: (0, 0)),
            ],
            out_specs=pl.BlockSpec((tile_rows, HW_pad), lambda i: (i, 0)),
        ),
        compiler_params=pltpu.CompilerParams(
            # Parallel grid axis so v7x can shard steps across its 2 TCs.
            dimension_semantics=("parallel",),
        ),
    )(x2d, s_rows)

    return out2d[:NC, :HW].reshape(N, C, H, W)


if __name__ == "__main__":
    # Deterministic parameter init matching ScaleLayer.__init__:
    #   scale = FloatTensor(shape).fill_(init_value)  with shape=(C,1,1)
    N, C, H, W = 2, 4, 16, 16
    init_value = 0.001
    scale = jnp.full((C, 1, 1), init_value, dtype=jnp.float32)

    key = jax.random.PRNGKey(0)
    x = jax.random.normal(key, (N, C, H, W), dtype=jnp.float32)

    y = scale_layer(x, scale)
    y = jax.block_until_ready(y)

    # Reference check (plain JAX broadcasting, matches torch semantics).
    y_ref = x * scale  # (N,C,H,W) * (C,1,1)
    assert y.shape == (N, C, H, W)
    assert y.dtype == x.dtype
    assert jnp.allclose(y, y_ref, atol=1e-6, rtol=1e-6)

    print("KERNEL_OK")
</pallas_src>

<mosaic_0001>
module attributes {stable_mosaic.version = 11 : i64} {
  func.func @_scale_kernel(%arg0: i32, %arg1: memref<8x256xf32, #tpu.memory_space<vmem>>, %arg2: memref<8x1xf32, #tpu.memory_space<vmem>>, %arg3: memref<8x256xf32, #tpu.memory_space<vmem>>) attributes {dimension_semantics = [#tpu.dimension_semantics<parallel>], iteration_bounds = array<i64: 1>, scalar_prefetch = 0 : i64, scratch_operands = 0 : i64, tpu.core_type = #tpu.core_type<tc>, window_params = [{transform_indices = @transform_0, window_bounds = array<i64: 8, 256>}, {pipeline_mode = #tpu.pipeline_mode<synchronous>, transform_indices = @transform_1, window_bounds = array<i64: 8, 1>}, {transform_indices = @transform_2, window_bounds = array<i64: 8, 256>}]} {
    %c8_i32 = arith.constant 8 : i32
    %0 = arith.muli %arg0, %c8_i32 : i32
    %1 = tpu.assume_multiple %0, 8 : i32
    %c0 = arith.constant 0 : index
    %c0_0 = arith.constant 0 : index
    %2 = vector.load %arg1[%c0, %c0_0] : memref<8x256xf32, #tpu.memory_space<vmem>>, vector<8x256xf32>
    %3 = arith.index_cast %1 : i32 to index
    %c0_1 = arith.constant 0 : index
    %4 = vector.load %arg2[%3, %c0_1] : memref<8x1xf32, #tpu.memory_space<vmem>>, vector<8x1xf32>
    %5 = vector.broadcast %4 : vector<8x1xf32> to vector<8x256xf32>
    %6 = arith.mulf %2, %5 : vector<8x256xf32>
    %c0_2 = arith.constant 0 : index
    %c0_3 = arith.constant 0 : index
    %7 = vector.load %arg3[%c0_2, %c0_3] : memref<8x256xf32, #tpu.memory_space<vmem>>, vector<8x256xf32>
    tpu.vector_store %arg3[%c0_2, %c0_3], %6 {strides = array<i32>} : memref<8x256xf32, #tpu.memory_space<vmem>>, vector<8x256xf32>,
    return
  }
  func.func @transform_0(%arg0: i32) -> (i32, i32) {
    %c0_i32 = arith.constant 0 : i32
    %c0_i32_0 = arith.constant 0 : i32
    return %arg0, %c0_i32 : i32, i32
  }
  func.func @transform_1(%arg0: i32) -> (i32, i32) {
    %c0_i32 = arith.constant 0 : i32
    %c0_i32_0 = arith.constant 0 : i32
    %c0_i32_1 = arith.constant 0 : i32
    return %c0_i32, %c0_i32_0 : i32, i32
  }
  func.func @transform_2(%arg0: i32) -> (i32, i32) {
    %c0_i32 = arith.constant 0 : i32
    %c0_i32_0 = arith.constant 0 : i32
    return %arg0, %c0_i32 : i32, i32
  }
}

</mosaic_0001>

<llo_original>
// kernel: tpu_custom_call.1
$region0: #{tpu_custom_call.1}
  #allocation0 [shape = 'u32[]', space=smem, size = 0x4, offset = 0x4, fixed_abs, tag = 'smem constant byte address 0x4 - core index']
  #allocation1 [shape = 'u32[144,128]{1,0:T(1,128)}', space=vmem, size = 0x12000, scoped, tag = 'internal scratch']
  %s0 = inlined_call_operand.hbm [shape: f32[8,256], index: 0, kind: input, shape index: {}]
  %s1 = inlined_call_operand.vmem [shape: f32[8,1], index: 1, kind: input, shape index: {}]
  %s2 = inlined_call_operand.hbm [shape: f32[8,256], index: 2, kind: output, shape index: {}]
  %s3 = sld [smem:[#allocation0]]
  $region22: #{tpu_custom_call.1} parent=0
    _
  %s5 = ssub.s32 1, %s3
  %s6 = scalar_select 0, %s5, %s3
  $region1: #{tpu_custom_call.1} parent=0
    #allocation2 [shape = 'u8[8192]{0}', space=vmem, size = 0x2000, scoped, tag = 'input window, operand 0, single buffered']
    #allocation3 [shape = 's32[1]{0}', space=sflag, size = 0x4, scoped, tag = 'scoped memory for tpu_custom_call.1']
    #allocation4 [shape = 's32[1]{0}', space=sflag, size = 0x4, scoped, tag = 'scoped memory for tpu_custom_call.1']
    #allocation5 [shape = 'u8[8192]{0}', space=vmem, size = 0x2000, scoped, tag = 'output window, operand 0, single buffered']
    %7 = vsyncpa [#allocation3], 0
    %8 = vsyncpa [#allocation4], 0
    // Predicated region
    $region2: #{tpu_custom_call.1} parent=1 // pred_check
      _
    $region3: #{tpu_custom_call.1} parent=1 // pred_check_branch
      %10 = sbr.rel (0) target = $region5
    $region4: #{tpu_custom_call.1} parent=1 // pred_region
      %s12 = ssub.s32 256, 256
      %13 = vsyncadd [#allocation3], %s12
      %s15 = sshll.u32 [#allocation2], 4
      %s16 = int_to_ptr.vmem [resolvable:$true] %s15
      %18 = dma.hbm_to_vmem [thread:$0]  %s0, 256, %s16, [#allocation3]
    $region5: #{tpu_custom_call.1} parent=1 // pred_fallthru
      _
    // Predicated region
    $region6: #{tpu_custom_call.1} parent=1 // pred_check
      _
    $region7: #{tpu_custom_call.1} parent=1 // pred_check_branch
      %20 = sbr.rel (0) target = $region9
    $region8: #{tpu_custom_call.1} parent=1 // pred_region
      _
    $region9: #{tpu_custom_call.1} parent=1 // pred_fallthru
      _
    // Predicated region
    $region10: #{tpu_custom_call.1} parent=1 // pred_check
      _
    $region11: #{tpu_custom_call.1} parent=1 // pred_check_branch
      %22 = sbr.rel (0) target = $region13
    $region12: #{tpu_custom_call.1} parent=1 // pred_region
      %23 = dma.done [#allocation3], 256
    $region13: #{tpu_custom_call.1} parent=1 // pred_fallthru
      _
    %s24 = smul.u32 0, 8
    %v25 = vld [vmem:[#allocation2] sm:$0xff]
    %v26 = vld [vmem:[#allocation2 + $0x8] sm:$0xff]
    %s27 = scalar_lea.vmem %s1, %s24
    %v28 = vld [vmem:[%s27] sm:$0xff]
    %30 = vset.pattern.permute.xlu0 0
    %31 = vperm.xlu0 %30, %v28
    %v32 = vpop.permute.xlu0 %31
    %v34 = vmul.f32 %v25, %v32
    %v35 = vmul.f32 %v26, %v32
    %36 = vst [vmem:[#allocation5] sm:$0xff] %v34
    %37 = vst [vmem:[#allocation5 + $0x8] sm:$0xff] %v35
    // Predicated region
    $region14: #{tpu_custom_call.1} parent=1 // pred_check
      _
    $region15: #{tpu_custom_call.1} parent=1 // pred_check_branch
      %39 = sbr.rel (0) target = $region17
    $region16: #{tpu_custom_call.1} parent=1 // pred_region
      %s41 = ssub.s32 256, 256
      %42 = vsyncadd [#allocation4], %s41
      %s44 = sshll.u32 [#allocation5], 4
      %s45 = int_to_ptr.vmem [resolvable:$true] %s44
      %47 = dma.vmem_to_hbm [thread:$0]  %s45, 256, %s2, [#allocation4]
    $region17: #{tpu_custom_call.1} parent=1 // pred_fallthru
      _
    // Predicated region
    $region18: #{tpu_custom_call.1} parent=1 // pred_check
      _
    $region19: #{tpu_custom_call.1} parent=1 // pred_check_branch
      %49 = sbr.rel (0) target = $region21
    $region20: #{tpu_custom_call.1} parent=1 // pred_region
      %50 = dma.done [#allocation4], 256
    $region21: #{tpu_custom_call.1} parent=1 // pred_fallthru
      _
    %51 = vsyncpa [#allocation3], 1
    %52 = vsyncpa [#allocation4], 1

</llo_original>
